<compile_context>
chip_gen: v5e
topology: v5e:2x2
jax: 0.10.0
libtpu: 0.0.40
codegen_flags: <defaults>
</compile_context>

<pallas_src>
import math
import numpy as np
import jax
import jax.numpy as jnp
from jax.experimental import pallas as pl
from jax.experimental.pallas import tpu as pltpu

SIGMA = 8.0
IGNORE_THRESHOLD = 0.5

_N_ACC = 8  # streams: 0:x 1:y 2:w 3:h 4:conf 5:cls 6:tcls_sum 7:spare


# ----------------------------------------------------------------------------
# In-kernel math helpers
# ----------------------------------------------------------------------------
def _softplus(z):
    # overflow-safe softplus (VPU + 1 EUP exp + 1 EUP log)
    return jnp.maximum(z, 0.0) + jnp.log(1.0 + jnp.exp(-jnp.abs(z)))


def _bce_logits(z, t):
    # BCE(sigmoid(z), t) == softplus(z) - t*z   (matches torch BCELoss away from
    # f32 sigmoid saturation / the -100 log clamp)
    return _softplus(z) - t * z


def _smooth_l1(a, b):
    d = jnp.abs(a - b)
    return jnp.where(d < 1.0, 0.5 * d * d, d - 0.5)


def _accum(acc_ref, k, x):
    """Fold an element-wise loss stream (bs_blk, S_blk, 128) into one (8, 128)
    vreg of the resident accumulator using only sublane-aligned slices and
    vreg adds (S_blk is always a multiple of 8)."""
    r = jnp.sum(x, axis=0) if x.shape[0] > 1 else x[0]      # (S_blk, 128)
    sb = r.shape[0]
    folded = r[0:8]
    for i in range(1, sb // 8):                             # static unroll
        folded = folded + r[8 * i:8 * (i + 1)]
    acc_ref[0, k] += folded


# ----------------------------------------------------------------------------
# Pallas kernel: streaming masked loss reduction
# ----------------------------------------------------------------------------
def _make_kernel(num_classes):
    C = num_classes

    def kernel(pred_ref, tgt_ref, tcls_ref, acc_ref):
        # pred_ref : (bs_blk, 5+C, S_blk, 128)  raw logits (bf16 in HBM)
        # tgt_ref  : (bs_blk, 7,   S_blk, 128)  mask, noobj, tx, ty, tw, th, scale
        # tcls_ref : (bs_blk, C,   S_blk, 128)
        # acc_ref  : (1, 8, 8, 128) f32 resident accumulator (one vreg / stream)
        t = pl.program_id(1)

        @pl.when(t == 0)
        def _init():
            acc_ref[...] = jnp.zeros(acc_ref.shape, acc_ref.dtype)

        f32 = jnp.float32
        zx = pred_ref[:, 0].astype(f32)
        zy = pred_ref[:, 1].astype(f32)
        w = pred_ref[:, 2].astype(f32)
        h = pred_ref[:, 3].astype(f32)
        zc = pred_ref[:, 4].astype(f32)

        mask = tgt_ref[:, 0].astype(f32)
        noobj = tgt_ref[:, 1].astype(f32)
        tx = tgt_ref[:, 2].astype(f32)
        ty = tgt_ref[:, 3].astype(f32)
        tw = tgt_ref[:, 4].astype(f32)
        th = tgt_ref[:, 5].astype(f32)
        scale = tgt_ref[:, 6].astype(f32)

        ms = mask * scale  # hoisted, reused by the 4 coordinate losses

        _accum(acc_ref, 0, ms * _bce_logits(zx, tx))
        _accum(acc_ref, 1, ms * _bce_logits(zy, ty))
        _accum(acc_ref, 2, ms * _smooth_l1(w, tw))
        _accum(acc_ref, 3, ms * _smooth_l1(h, th))

        # conf: bce(conf*mask, mask) + 0.5*bce(noobj*conf, 0) with mask/noobj in {0,1}
        #   == mask*softplus(-zc) + 0.5*noobj*softplus(zc)
        # and softplus(-z) = softplus(z) - z  -> a single softplus serves both.
        sp = _softplus(zc)
        _accum(acc_ref, 4, mask * (sp - zc) + 0.5 * noobj * sp)

        # class loss vectorized over the class axis (leading dim -> vreg adds)
        zcls = pred_ref[:, 5:5 + C].astype(f32)      # (bs_blk, C, S_blk, 128)
        tk = tcls_ref[...].astype(f32)
        _accum(acc_ref, 5, mask * jnp.sum(_bce_logits(zcls, tk), axis=1))
        _accum(acc_ref, 6, jnp.sum(tk, axis=1))
        # stream 7 stays zero (spare)

    return kernel


# ----------------------------------------------------------------------------
# Wrapper
# ----------------------------------------------------------------------------
def yolo_loss_pallas(input_nchw, tgt7, tcls_cfirst, n_obj, *, in_dtype=jnp.bfloat16):
    """input_nchw: (bs, 5+C, H, W) raw network output.
    tgt7: (bs, 7, H, W) planes [mask, noobj, tx, ty, tw, th, scale].
    tcls_cfirst: (bs, C, H, W) one-hot class targets.  n_obj: scalar."""
    bs, A, H, W = input_nchw.shape
    C = A - 5
    HW = H * W

    # fold spatial axis into (S, 128); S aligned to 16 sublane rows (covers the
    # f32 (8,128) and packed-bf16 (16,128) native tiles; <= 2K elems of padding)
    S = -(-HW // 128)
    S = -(-S // 16) * 16

    # batch drives the parallel grid axis (keeps both v7x TensorCores busy)
    if bs % 2 == 0 and bs >= 2:
        P, bs_blk = 2, bs // 2
    else:
        P, bs_blk = 1, bs

    # spatial tile (sublane rows) from a VMEM budget, up to 128 rows (16K lanes)
    itemsize = jnp.dtype(in_dtype).itemsize
    dbl_buf_bytes_per_row = (A + 7 + C) * 128 * itemsize * 2 * bs_blk
    cap = int((8 * 1024 * 1024) // max(dbl_buf_bytes_per_row, 1))
    cap = max(16, min(128, (cap // 16) * 16))
    if S <= cap:
        S_blk, T = S, 1
    else:
        S_blk = cap
        T = -(-S // S_blk)
        S = T * S_blk
    HW_pad = S * 128

    def to_tiles(x):
        x = jnp.asarray(x)
        K = x.shape[1]
        x = x.astype(in_dtype).reshape(bs, K, HW)
        if HW_pad != HW:
            # zero pad => mask = noobj = tcls = 0 in padded cells (no contribution)
            x = jnp.pad(x, ((0, 0), (0, 0), (0, HW_pad - HW)))
        return x.reshape(bs, K, S, 128)

    pred = to_tiles(input_nchw)
    tgt = to_tiles(tgt7)
    tcl = to_tiles(tcls_cfirst)

    in_idx = lambda p, t: (p, 0, t, 0)

    out = pl.pallas_call(
        _make_kernel(C),
        out_shape=jax.ShapeDtypeStruct((P, _N_ACC, 8, 128), jnp.float32),
        grid_spec=pltpu.PrefetchScalarGridSpec(
            num_scalar_prefetch=0,
            grid=(P, T),
            in_specs=[
                pl.BlockSpec((bs_blk, A, S_blk, 128), in_idx),
                pl.BlockSpec((bs_blk, 7, S_blk, 128), in_idx),
                pl.BlockSpec((bs_blk, C, S_blk, 128), in_idx),
            ],
            out_specs=pl.BlockSpec((1, _N_ACC, 8, 128), lambda p, t: (p, 0, 0, 0)),
        ),
        compiler_params=pltpu.CompilerParams(
            dimension_semantics=("parallel", "arbitrary")),
    )(pred, tgt, tcl)

    # tiny final reduction (a few KB) + normalization in the wrapper
    partials = jnp.sum(out, axis=(0, 2, 3))                 # (8,)
    # NOTE: n_obj == 0 produces inf, same failure mode as the PyTorch reference.
    inv_n = 1.0 / jnp.asarray(n_obj, jnp.float32)
    loss_x = partials[0] * inv_n
    loss_y = partials[1] * inv_n
    loss_w = partials[2] * inv_n
    loss_h = partials[3] * inv_n
    loss_conf = partials[4] * inv_n
    loss_tcls = jnp.where(partials[6] > 0.0, partials[5] * inv_n, jnp.float32(0.0))
    loss = loss_x + loss_y + loss_w + loss_h + loss_conf + loss_tcls
    return jnp.stack([loss, loss_x, loss_y, loss_w, loss_h, loss_conf, loss_tcls])


# ----------------------------------------------------------------------------
# Host-side target construction (mirrors PyTorch get_target, which runs a
# data-dependent Python loop on detached predictions). Builds the planes
# directly in the kernel layout: (bs, 7, H, W) and (bs, C, H, W).
# ----------------------------------------------------------------------------
def _sigmoid_np(z):
    return 1.0 / (1.0 + np.exp(-z))


def host_pred_boxes(inp_np, sigma):
    bs, A, H, W = inp_np.shape
    pred = np.transpose(inp_np, (0, 2, 3, 1)).astype(np.float32)
    x = _sigmoid_np(pred[..., 0])
    y = _sigmoid_np(pred[..., 1])
    w = pred[..., 2]
    h = pred[..., 3]
    gx = np.broadcast_to(np.arange(W, dtype=np.float32)[None, None, :], (bs, H, W))
    gy = np.broadcast_to(np.arange(H, dtype=np.float32)[None, :, None], (bs, H, W))
    return np.stack([x + gx, y + gy, np.exp(w) * sigma, np.exp(h) * sigma], axis=-1)


def bbox_iou_np(box1, box2):
    b1x1, b1x2 = box1[:, 0] - box1[:, 2] / 2, box1[:, 0] + box1[:, 2] / 2
    b1y1, b1y2 = box1[:, 1] - box1[:, 3] / 2, box1[:, 1] + box1[:, 3] / 2
    b2x1, b2x2 = box2[:, 0] - box2[:, 2] / 2, box2[:, 0] + box2[:, 2] / 2
    b2y1, b2y2 = box2[:, 1] - box2[:, 3] / 2, box2[:, 1] + box2[:, 3] / 2
    ix1 = np.maximum(b1x1, b2x1)
    iy1 = np.maximum(b1y1, b2y1)
    ix2 = np.minimum(b1x2, b2x2)
    iy2 = np.minimum(b1y2, b2y2)
    inter = np.clip(ix2 - ix1, 0, None) * np.clip(iy2 - iy1, 0, None)
    a1 = (b1x2 - b1x1) * (b1y2 - b1y1)
    a2 = (b2x2 - b2x1) * (b2y2 - b2y1)
    return inter / (a1 + a2 - inter + 1e-16)


def get_target_np(targets, in_w, in_h, pred_boxes, num_classes):
    n_obj = 0
    bs = targets.shape[0]
    # planes: 0 mask, 1 noobj, 2 tx, 3 ty, 4 tw, 5 th, 6 scale
    tgt = np.zeros((bs, 7, in_h, in_w), np.float32)
    tgt[:, 1] = 1.0
    tcls = np.zeros((bs, num_classes, in_h, in_w), np.float32)
    for b in range(bs):
        pred_box = pred_boxes[b].reshape(-1, 4)
        for t in range(targets.shape[1]):
            if targets[b, t].sum() == 0:
                continue
            n_obj += 1
            gx = targets[b, t, 1] * in_w
            gy = targets[b, t, 2] * in_h
            gw = targets[b, t, 3] * in_w
            gh = targets[b, t, 4] * in_h
            gi, gj = int(gx), int(gy)
            if tgt[b, 0, gj, gi] == 1:
                n_obj -= 1
                continue
            gt_box = np.array([[gx, gy, gw, gh]], np.float32)
            pred_ious = bbox_iou_np(gt_box, pred_box).reshape(in_h, in_w)
            tgt[b, 1][pred_ious >= IGNORE_THRESHOLD] = 0
            tgt[b, 0, gj, gi] = 1
            tgt[b, 1, gj, gi] = 0
            tgt[b, 6, gj, gi] = 2 - targets[b, t, 3] * targets[b, t, 4]
            tgt[b, 2, gj, gi] = gx - gi
            tgt[b, 3, gj, gi] = gy - gj
            tgt[b, 4, gj, gi] = math.log(gw / SIGMA + 1e-16)
            tgt[b, 5, gj, gi] = math.log(gh / SIGMA + 1e-16)
            tcls[b, int(targets[b, t, 0]), gj, gi] = 1
    return n_obj, tgt, tcls


# ----------------------------------------------------------------------------
# numpy reference (mirrors the PyTorch forward) for a sanity check
# ----------------------------------------------------------------------------
def reference_loss_np(inp, tgt7, tcls_cfirst, n_obj):
    mask, noobj = tgt7[:, 0], tgt7[:, 1]
    tx, ty = tgt7[:, 2], tgt7[:, 3]
    tw, th, scales = tgt7[:, 4], tgt7[:, 5], tgt7[:, 6]
    tcls = np.transpose(tcls_cfirst, (0, 2, 3, 1))

    pred = np.transpose(inp, (0, 2, 3, 1)).astype(np.float32)
    x = _sigmoid_np(pred[..., 0])
    y = _sigmoid_np(pred[..., 1])
    w = pred[..., 2]
    h = pred[..., 3]
    conf = _sigmoid_np(pred[..., 4])
    pred_cls = _sigmoid_np(pred[..., 5:])

    def bce(p, t):
        with np.errstate(divide="ignore"):
            lp = np.maximum(np.log(p), -100.0)
            l1p = np.maximum(np.log(1.0 - p), -100.0)
        return -(t * lp + (1.0 - t) * l1p)

    def sl1(a, b):
        d = np.abs(a - b)
        return np.where(d < 1.0, 0.5 * d * d, d - 0.5)

    m = mask == 1
    lx = (scales[m] * bce(x[m], tx[m])).sum() / n_obj
    ly = (scales[m] * bce(y[m], ty[m])).sum() / n_obj
    lw = (scales[m] * sl1(w[m], tw[m])).sum() / n_obj
    lh = (scales[m] * sl1(h[m], th[m])).sum() / n_obj
    lconf = bce(conf * mask, mask).sum() / n_obj + 0.5 * bce(noobj * conf, noobj * 0).sum() / n_obj
    if tcls[tcls == 1].shape[0] == 0:
        ltcls = 0.0
    else:
        ltcls = bce(pred_cls[m], tcls[m]).sum() / n_obj
    total = lx + ly + lw + lh + lconf + ltcls
    return np.array([total, lx, ly, lw, lh, lconf, ltcls], np.float32)


# ----------------------------------------------------------------------------
if __name__ == "__main__":
    bs, num_classes, H, W = 2, 3, 16, 16
    A = 5 + num_classes

    key = jax.random.PRNGKey(0)
    inp = 0.5 * jax.random.normal(key, (bs, A, H, W), dtype=jnp.float32)
    inp_np = np.asarray(inp)

    # deterministic synthetic ground-truth boxes: [class, cx, cy, w, h] (normalized)
    targets = np.zeros((bs, 4, 5), np.float32)
    targets[0, 0] = [0, 0.30, 0.40, 0.20, 0.25]
    targets[0, 1] = [2, 0.70, 0.60, 0.15, 0.30]
    targets[1, 0] = [1, 0.50, 0.50, 0.40, 0.35]
    targets[1, 1] = [2, 0.20, 0.80, 0.10, 0.10]

    pred_boxes = host_pred_boxes(inp_np, SIGMA)  # detached preds, as in PyTorch
    n_obj, tgt7, tcls = get_target_np(targets, W, H, pred_boxes, num_classes)

    out = yolo_loss_pallas(inp, tgt7, tcls, float(n_obj))
    out = jax.block_until_ready(out)

    # reference computed from the same bf16-quantized values the kernel consumes
    def bf16_q(a):
        return np.asarray(jnp.asarray(a, jnp.bfloat16).astype(jnp.float32))

    ref = reference_loss_np(bf16_q(inp_np), bf16_q(tgt7), bf16_q(tcls), float(n_obj))
    np.testing.assert_allclose(np.asarray(out), ref, rtol=1e-3, atol=2e-4)

    print("KERNEL_OK")
</pallas_src>

<mosaic_0001>
module attributes {stable_mosaic.version = 11 : i64} {
  func.func @kernel(%arg0: i32, %arg1: i32, %arg2: memref<1x8x16x128xbf16, #tpu.memory_space<vmem>>, %arg3: memref<1x7x16x128xbf16, #tpu.memory_space<vmem>>, %arg4: memref<1x3x16x128xbf16, #tpu.memory_space<vmem>>, %arg5: memref<1x8x8x128xf32, #tpu.memory_space<vmem>>) attributes {dimension_semantics = [#tpu.dimension_semantics<parallel>, #tpu.dimension_semantics<arbitrary>], iteration_bounds = array<i64: 2, 1>, scalar_prefetch = 0 : i64, scratch_operands = 0 : i64, tpu.core_type = #tpu.core_type<tc>, window_params = [{transform_indices = @transform_0, window_bounds = array<i64: 1, 8, 16, 128>}, {transform_indices = @transform_1, window_bounds = array<i64: 1, 7, 16, 128>}, {transform_indices = @transform_2, window_bounds = array<i64: 1, 3, 16, 128>}, {transform_indices = @transform_3, window_bounds = array<i64: 1, 8, 8, 128>}]} {
    %c0_i32 = arith.constant 0 : i32
    %0 = arith.cmpi eq, %arg1, %c0_i32 : i32
    %1 = arith.extui %0 : i1 to i32
    %c0_i32_0 = arith.constant 0 : i32
    %2 = arith.cmpi ne, %1, %c0_i32_0 : i32
    scf.if %2 {
      %cst_126 = arith.constant 0.000000e+00 : f32
      %193 = vector.broadcast %cst_126 : f32 to vector<1x8x8x128xf32>
      %c0_127 = arith.constant 0 : index
      %c0_128 = arith.constant 0 : index
      %c0_129 = arith.constant 0 : index
      %c0_130 = arith.constant 0 : index
      %194 = vector.load %arg5[%c0_127, %c0_128, %c0_129, %c0_130] : memref<1x8x8x128xf32, #tpu.memory_space<vmem>>, vector<1x8x8x128xf32>
      tpu.vector_store %arg5[%c0_127, %c0_128, %c0_129, %c0_130], %193 {strides = array<i32>} : memref<1x8x8x128xf32, #tpu.memory_space<vmem>>, vector<1x8x8x128xf32>,
    } else {
    }
    %c0 = arith.constant 0 : index
    %c0_1 = arith.constant 0 : index
    %c0_2 = arith.constant 0 : index
    %c0_3 = arith.constant 0 : index
    %3 = vector.load %arg2[%c0, %c0_1, %c0_2, %c0_3] : memref<1x8x16x128xbf16, #tpu.memory_space<vmem>>, vector<1x1x16x128xbf16>
    %4 = vector.shape_cast %3 : vector<1x1x16x128xbf16> to vector<1x16x128xbf16>
    %5 = arith.extf %4 : vector<1x16x128xbf16> to vector<1x16x128xf32>
    %c0_4 = arith.constant 0 : index
    %c1 = arith.constant 1 : index
    %c0_5 = arith.constant 0 : index
    %c0_6 = arith.constant 0 : index
    %6 = vector.load %arg2[%c0_4, %c1, %c0_5, %c0_6] : memref<1x8x16x128xbf16, #tpu.memory_space<vmem>>, vector<1x1x16x128xbf16>
    %7 = vector.shape_cast %6 : vector<1x1x16x128xbf16> to vector<1x16x128xbf16>
    %8 = arith.extf %7 : vector<1x16x128xbf16> to vector<1x16x128xf32>
    %c0_7 = arith.constant 0 : index
    %c2 = arith.constant 2 : index
    %c0_8 = arith.constant 0 : index
    %c0_9 = arith.constant 0 : index
    %9 = vector.load %arg2[%c0_7, %c2, %c0_8, %c0_9] : memref<1x8x16x128xbf16, #tpu.memory_space<vmem>>, vector<1x1x16x128xbf16>
    %10 = vector.shape_cast %9 : vector<1x1x16x128xbf16> to vector<1x16x128xbf16>
    %11 = arith.extf %10 : vector<1x16x128xbf16> to vector<1x16x128xf32>
    %c0_10 = arith.constant 0 : index
    %c3 = arith.constant 3 : index
    %c0_11 = arith.constant 0 : index
    %c0_12 = arith.constant 0 : index
    %12 = vector.load %arg2[%c0_10, %c3, %c0_11, %c0_12] : memref<1x8x16x128xbf16, #tpu.memory_space<vmem>>, vector<1x1x16x128xbf16>
    %13 = vector.shape_cast %12 : vector<1x1x16x128xbf16> to vector<1x16x128xbf16>
    %14 = arith.extf %13 : vector<1x16x128xbf16> to vector<1x16x128xf32>
    %c0_13 = arith.constant 0 : index
    %c4 = arith.constant 4 : index
    %c0_14 = arith.constant 0 : index
    %c0_15 = arith.constant 0 : index
    %15 = vector.load %arg2[%c0_13, %c4, %c0_14, %c0_15] : memref<1x8x16x128xbf16, #tpu.memory_space<vmem>>, vector<1x1x16x128xbf16>
    %16 = vector.shape_cast %15 : vector<1x1x16x128xbf16> to vector<1x16x128xbf16>
    %17 = arith.extf %16 : vector<1x16x128xbf16> to vector<1x16x128xf32>
    %c0_16 = arith.constant 0 : index
    %c0_17 = arith.constant 0 : index
    %c0_18 = arith.constant 0 : index
    %c0_19 = arith.constant 0 : index
    %18 = vector.load %arg3[%c0_16, %c0_17, %c0_18, %c0_19] : memref<1x7x16x128xbf16, #tpu.memory_space<vmem>>, vector<1x1x16x128xbf16>
    %19 = vector.shape_cast %18 : vector<1x1x16x128xbf16> to vector<1x16x128xbf16>
    %20 = arith.extf %19 : vector<1x16x128xbf16> to vector<1x16x128xf32>
    %c0_20 = arith.constant 0 : index
    %c1_21 = arith.constant 1 : index
    %c0_22 = arith.constant 0 : index
    %c0_23 = arith.constant 0 : index
    %21 = vector.load %arg3[%c0_20, %c1_21, %c0_22, %c0_23] : memref<1x7x16x128xbf16, #tpu.memory_space<vmem>>, vector<1x1x16x128xbf16>
    %22 = vector.shape_cast %21 : vector<1x1x16x128xbf16> to vector<1x16x128xbf16>
    %23 = arith.extf %22 : vector<1x16x128xbf16> to vector<1x16x128xf32>
    %c0_24 = arith.constant 0 : index
    %c2_25 = arith.constant 2 : index
    %c0_26 = arith.constant 0 : index
    %c0_27 = arith.constant 0 : index
    %24 = vector.load %arg3[%c0_24, %c2_25, %c0_26, %c0_27] : memref<1x7x16x128xbf16, #tpu.memory_space<vmem>>, vector<1x1x16x128xbf16>
    %25 = vector.shape_cast %24 : vector<1x1x16x128xbf16> to vector<1x16x128xbf16>
    %26 = arith.extf %25 : vector<1x16x128xbf16> to vector<1x16x128xf32>
    %c0_28 = arith.constant 0 : index
    %c3_29 = arith.constant 3 : index
    %c0_30 = arith.constant 0 : index
    %c0_31 = arith.constant 0 : index
    %27 = vector.load %arg3[%c0_28, %c3_29, %c0_30, %c0_31] : memref<1x7x16x128xbf16, #tpu.memory_space<vmem>>, vector<1x1x16x128xbf16>
    %28 = vector.shape_cast %27 : vector<1x1x16x128xbf16> to vector<1x16x128xbf16>
    %29 = arith.extf %28 : vector<1x16x128xbf16> to vector<1x16x128xf32>
    %c0_32 = arith.constant 0 : index
    %c4_33 = arith.constant 4 : index
    %c0_34 = arith.constant 0 : index
    %c0_35 = arith.constant 0 : index
    %30 = vector.load %arg3[%c0_32, %c4_33, %c0_34, %c0_35] : memref<1x7x16x128xbf16, #tpu.memory_space<vmem>>, vector<1x1x16x128xbf16>
    %31 = vector.shape_cast %30 : vector<1x1x16x128xbf16> to vector<1x16x128xbf16>
    %32 = arith.extf %31 : vector<1x16x128xbf16> to vector<1x16x128xf32>
    %c0_36 = arith.constant 0 : index
    %c5 = arith.constant 5 : index
    %c0_37 = arith.constant 0 : index
    %c0_38 = arith.constant 0 : index
    %33 = vector.load %arg3[%c0_36, %c5, %c0_37, %c0_38] : memref<1x7x16x128xbf16, #tpu.memory_space<vmem>>, vector<1x1x16x128xbf16>
    %34 = vector.shape_cast %33 : vector<1x1x16x128xbf16> to vector<1x16x128xbf16>
    %35 = arith.extf %34 : vector<1x16x128xbf16> to vector<1x16x128xf32>
    %c0_39 = arith.constant 0 : index
    %c6 = arith.constant 6 : index
    %c0_40 = arith.constant 0 : index
    %c0_41 = arith.constant 0 : index
    %36 = vector.load %arg3[%c0_39, %c6, %c0_40, %c0_41] : memref<1x7x16x128xbf16, #tpu.memory_space<vmem>>, vector<1x1x16x128xbf16>
    %37 = vector.shape_cast %36 : vector<1x1x16x128xbf16> to vector<1x16x128xbf16>
    %38 = arith.extf %37 : vector<1x16x128xbf16> to vector<1x16x128xf32>
    %39 = arith.mulf %20, %38 : vector<1x16x128xf32>
    %cst = arith.constant 0.000000e+00 : f32
    %40 = vector.broadcast %cst : f32 to vector<1x16x128xf32>
    %41 = arith.maximumf %5, %40 : vector<1x16x128xf32>
    %42 = math.absf %5 : vector<1x16x128xf32>
    %cst_42 = arith.constant 0.000000e+00 : f32
    %43 = vector.broadcast %cst_42 : f32 to vector<1x16x128xf32>
    %44 = arith.subf %43, %42 : vector<1x16x128xf32>
    %45 = math.exp %44 : vector<1x16x128xf32>
    %cst_43 = arith.constant 1.000000e+00 : f32
    %46 = vector.broadcast %cst_43 : f32 to vector<1x16x128xf32>
    %47 = arith.addf %46, %45 : vector<1x16x128xf32>
    %48 = math.log %47 : vector<1x16x128xf32>
    %49 = arith.addf %41, %48 : vector<1x16x128xf32>
    %50 = arith.mulf %26, %5 : vector<1x16x128xf32>
    %51 = arith.subf %49, %50 : vector<1x16x128xf32>
    %52 = arith.mulf %39, %51 : vector<1x16x128xf32>
    %53 = vector.shape_cast %52 : vector<1x16x128xf32> to vector<16x128xf32>
    %54 = vector.extract_strided_slice %53 {offsets = [0, 0], sizes = [8, 128], strides = [1, 1]} : vector<16x128xf32> to vector<8x128xf32>
    %55 = vector.extract_strided_slice %53 {offsets = [8, 0], sizes = [8, 128], strides = [1, 1]} : vector<16x128xf32> to vector<8x128xf32>
    %56 = arith.addf %54, %55 : vector<8x128xf32>
    %c0_44 = arith.constant 0 : index
    %c0_45 = arith.constant 0 : index
    %c0_46 = arith.constant 0 : index
    %c0_47 = arith.constant 0 : index
    %57 = vector.load %arg5[%c0_44, %c0_45, %c0_46, %c0_47] : memref<1x8x8x128xf32, #tpu.memory_space<vmem>>, vector<1x1x8x128xf32>
    %58 = vector.shape_cast %57 : vector<1x1x8x128xf32> to vector<8x128xf32>
    %59 = arith.addf %58, %56 : vector<8x128xf32>
    %c0_48 = arith.constant 0 : index
    %c0_49 = arith.constant 0 : index
    %c0_50 = arith.constant 0 : index
    %c0_51 = arith.constant 0 : index
    %60 = vector.load %arg5[%c0_48, %c0_49, %c0_50, %c0_51] : memref<1x8x8x128xf32, #tpu.memory_space<vmem>>, vector<1x1x8x128xf32>
    %61 = vector.shape_cast %60 : vector<1x1x8x128xf32> to vector<8x128xf32>
    %62 = vector.shape_cast %59 : vector<8x128xf32> to vector<1x1x8x128xf32>
    tpu.vector_store %arg5[%c0_48, %c0_49, %c0_50, %c0_51], %62 {strides = array<i32>} : memref<1x8x8x128xf32, #tpu.memory_space<vmem>>, vector<1x1x8x128xf32>,
    %cst_52 = arith.constant 0.000000e+00 : f32
    %63 = vector.broadcast %cst_52 : f32 to vector<1x16x128xf32>
    %64 = arith.maximumf %8, %63 : vector<1x16x128xf32>
    %65 = math.absf %8 : vector<1x16x128xf32>
    %cst_53 = arith.constant 0.000000e+00 : f32
    %66 = vector.broadcast %cst_53 : f32 to vector<1x16x128xf32>
    %67 = arith.subf %66, %65 : vector<1x16x128xf32>
    %68 = math.exp %67 : vector<1x16x128xf32>
    %cst_54 = arith.constant 1.000000e+00 : f32
    %69 = vector.broadcast %cst_54 : f32 to vector<1x16x128xf32>
    %70 = arith.addf %69, %68 : vector<1x16x128xf32>
    %71 = math.log %70 : vector<1x16x128xf32>
    %72 = arith.addf %64, %71 : vector<1x16x128xf32>
    %73 = arith.mulf %29, %8 : vector<1x16x128xf32>
    %74 = arith.subf %72, %73 : vector<1x16x128xf32>
    %75 = arith.mulf %39, %74 : vector<1x16x128xf32>
    %76 = vector.shape_cast %75 : vector<1x16x128xf32> to vector<16x128xf32>
    %77 = vector.extract_strided_slice %76 {offsets = [0, 0], sizes = [8, 128], strides = [1, 1]} : vector<16x128xf32> to vector<8x128xf32>
    %78 = vector.extract_strided_slice %76 {offsets = [8, 0], sizes = [8, 128], strides = [1, 1]} : vector<16x128xf32> to vector<8x128xf32>
    %79 = arith.addf %77, %78 : vector<8x128xf32>
    %c0_55 = arith.constant 0 : index
    %c1_56 = arith.constant 1 : index
    %c0_57 = arith.constant 0 : index
    %c0_58 = arith.constant 0 : index
    %80 = vector.load %arg5[%c0_55, %c1_56, %c0_57, %c0_58] : memref<1x8x8x128xf32, #tpu.memory_space<vmem>>, vector<1x1x8x128xf32>
    %81 = vector.shape_cast %80 : vector<1x1x8x128xf32> to vector<8x128xf32>
    %82 = arith.addf %81, %79 : vector<8x128xf32>
    %c0_59 = arith.constant 0 : index
    %c1_60 = arith.constant 1 : index
    %c0_61 = arith.constant 0 : index
    %c0_62 = arith.constant 0 : index
    %83 = vector.load %arg5[%c0_59, %c1_60, %c0_61, %c0_62] : memref<1x8x8x128xf32, #tpu.memory_space<vmem>>, vector<1x1x8x128xf32>
    %84 = vector.shape_cast %83 : vector<1x1x8x128xf32> to vector<8x128xf32>
    %85 = vector.shape_cast %82 : vector<8x128xf32> to vector<1x1x8x128xf32>
    tpu.vector_store %arg5[%c0_59, %c1_60, %c0_61, %c0_62], %85 {strides = array<i32>} : memref<1x8x8x128xf32, #tpu.memory_space<vmem>>, vector<1x1x8x128xf32>,
    %86 = arith.subf %11, %32 : vector<1x16x128xf32>
    %87 = math.absf %86 : vector<1x16x128xf32>
    %cst_63 = arith.constant 1.000000e+00 : f32
    %88 = vector.broadcast %cst_63 : f32 to vector<1x16x128xf32>
    %89 = arith.cmpf olt, %87, %88 : vector<1x16x128xf32>
    %cst_64 = arith.constant 5.000000e-01 : f32
    %90 = vector.broadcast %cst_64 : f32 to vector<1x16x128xf32>
    %91 = arith.mulf %90, %87 : vector<1x16x128xf32>
    %92 = arith.mulf %91, %87 : vector<1x16x128xf32>
    %cst_65 = arith.constant 5.000000e-01 : f32
    %93 = vector.broadcast %cst_65 : f32 to vector<1x16x128xf32>
    %94 = arith.subf %87, %93 : vector<1x16x128xf32>
    %95 = arith.select %89, %92, %94 : vector<1x16x128xi1>, vector<1x16x128xf32>
    %96 = arith.mulf %39, %95 : vector<1x16x128xf32>
    %97 = vector.shape_cast %96 : vector<1x16x128xf32> to vector<16x128xf32>
    %98 = vector.extract_strided_slice %97 {offsets = [0, 0], sizes = [8, 128], strides = [1, 1]} : vector<16x128xf32> to vector<8x128xf32>
    %99 = vector.extract_strided_slice %97 {offsets = [8, 0], sizes = [8, 128], strides = [1, 1]} : vector<16x128xf32> to vector<8x128xf32>
    %100 = arith.addf %98, %99 : vector<8x128xf32>
    %c0_66 = arith.constant 0 : index
    %c2_67 = arith.constant 2 : index
    %c0_68 = arith.constant 0 : index
    %c0_69 = arith.constant 0 : index
    %101 = vector.load %arg5[%c0_66, %c2_67, %c0_68, %c0_69] : memref<1x8x8x128xf32, #tpu.memory_space<vmem>>, vector<1x1x8x128xf32>
    %102 = vector.shape_cast %101 : vector<1x1x8x128xf32> to vector<8x128xf32>
    %103 = arith.addf %102, %100 : vector<8x128xf32>
    %c0_70 = arith.constant 0 : index
    %c2_71 = arith.constant 2 : index
    %c0_72 = arith.constant 0 : index
    %c0_73 = arith.constant 0 : index
    %104 = vector.load %arg5[%c0_70, %c2_71, %c0_72, %c0_73] : memref<1x8x8x128xf32, #tpu.memory_space<vmem>>, vector<1x1x8x128xf32>
    %105 = vector.shape_cast %104 : vector<1x1x8x128xf32> to vector<8x128xf32>
    %106 = vector.shape_cast %103 : vector<8x128xf32> to vector<1x1x8x128xf32>
    tpu.vector_store %arg5[%c0_70, %c2_71, %c0_72, %c0_73], %106 {strides = array<i32>} : memref<1x8x8x128xf32, #tpu.memory_space<vmem>>, vector<1x1x8x128xf32>,
    %107 = arith.subf %14, %35 : vector<1x16x128xf32>
    %108 = math.absf %107 : vector<1x16x128xf32>
    %cst_74 = arith.constant 1.000000e+00 : f32
    %109 = vector.broadcast %cst_74 : f32 to vector<1x16x128xf32>
    %110 = arith.cmpf olt, %108, %109 : vector<1x16x128xf32>
    %cst_75 = arith.constant 5.000000e-01 : f32
    %111 = vector.broadcast %cst_75 : f32 to vector<1x16x128xf32>
    %112 = arith.mulf %111, %108 : vector<1x16x128xf32>
    %113 = arith.mulf %112, %108 : vector<1x16x128xf32>
    %cst_76 = arith.constant 5.000000e-01 : f32
    %114 = vector.broadcast %cst_76 : f32 to vector<1x16x128xf32>
    %115 = arith.subf %108, %114 : vector<1x16x128xf32>
    %116 = arith.select %110, %113, %115 : vector<1x16x128xi1>, vector<1x16x128xf32>
    %117 = arith.mulf %39, %116 : vector<1x16x128xf32>
    %118 = vector.shape_cast %117 : vector<1x16x128xf32> to vector<16x128xf32>
    %119 = vector.extract_strided_slice %118 {offsets = [0, 0], sizes = [8, 128], strides = [1, 1]} : vector<16x128xf32> to vector<8x128xf32>
    %120 = vector.extract_strided_slice %118 {offsets = [8, 0], sizes = [8, 128], strides = [1, 1]} : vector<16x128xf32> to vector<8x128xf32>
    %121 = arith.addf %119, %120 : vector<8x128xf32>
    %c0_77 = arith.constant 0 : index
    %c3_78 = arith.constant 3 : index
    %c0_79 = arith.constant 0 : index
    %c0_80 = arith.constant 0 : index
    %122 = vector.load %arg5[%c0_77, %c3_78, %c0_79, %c0_80] : memref<1x8x8x128xf32, #tpu.memory_space<vmem>>, vector<1x1x8x128xf32>
    %123 = vector.shape_cast %122 : vector<1x1x8x128xf32> to vector<8x128xf32>
    %124 = arith.addf %123, %121 : vector<8x128xf32>
    %c0_81 = arith.constant 0 : index
    %c3_82 = arith.constant 3 : index
    %c0_83 = arith.constant 0 : index
    %c0_84 = arith.constant 0 : index
    %125 = vector.load %arg5[%c0_81, %c3_82, %c0_83, %c0_84] : memref<1x8x8x128xf32, #tpu.memory_space<vmem>>, vector<1x1x8x128xf32>
    %126 = vector.shape_cast %125 : vector<1x1x8x128xf32> to vector<8x128xf32>
    %127 = vector.shape_cast %124 : vector<8x128xf32> to vector<1x1x8x128xf32>
    tpu.vector_store %arg5[%c0_81, %c3_82, %c0_83, %c0_84], %127 {strides = array<i32>} : memref<1x8x8x128xf32, #tpu.memory_space<vmem>>, vector<1x1x8x128xf32>,
    %cst_85 = arith.constant 0.000000e+00 : f32
    %128 = vector.broadcast %cst_85 : f32 to vector<1x16x128xf32>
    %129 = arith.maximumf %17, %128 : vector<1x16x128xf32>
    %130 = math.absf %17 : vector<1x16x128xf32>
    %cst_86 = arith.constant 0.000000e+00 : f32
    %131 = vector.broadcast %cst_86 : f32 to vector<1x16x128xf32>
    %132 = arith.subf %131, %130 : vector<1x16x128xf32>
    %133 = math.exp %132 : vector<1x16x128xf32>
    %cst_87 = arith.constant 1.000000e+00 : f32
    %134 = vector.broadcast %cst_87 : f32 to vector<1x16x128xf32>
    %135 = arith.addf %134, %133 : vector<1x16x128xf32>
    %136 = math.log %135 : vector<1x16x128xf32>
    %137 = arith.addf %129, %136 : vector<1x16x128xf32>
    %138 = arith.subf %137, %17 : vector<1x16x128xf32>
    %139 = arith.mulf %20, %138 : vector<1x16x128xf32>
    %cst_88 = arith.constant 5.000000e-01 : f32
    %140 = vector.broadcast %cst_88 : f32 to vector<1x16x128xf32>
    %141 = arith.mulf %140, %23 : vector<1x16x128xf32>
    %142 = arith.mulf %141, %137 : vector<1x16x128xf32>
    %143 = arith.addf %139, %142 : vector<1x16x128xf32>
    %144 = vector.shape_cast %143 : vector<1x16x128xf32> to vector<16x128xf32>
    %145 = vector.extract_strided_slice %144 {offsets = [0, 0], sizes = [8, 128], strides = [1, 1]} : vector<16x128xf32> to vector<8x128xf32>
    %146 = vector.extract_strided_slice %144 {offsets = [8, 0], sizes = [8, 128], strides = [1, 1]} : vector<16x128xf32> to vector<8x128xf32>
    %147 = arith.addf %145, %146 : vector<8x128xf32>
    %c0_89 = arith.constant 0 : index
    %c4_90 = arith.constant 4 : index
    %c0_91 = arith.constant 0 : index
    %c0_92 = arith.constant 0 : index
    %148 = vector.load %arg5[%c0_89, %c4_90, %c0_91, %c0_92] : memref<1x8x8x128xf32, #tpu.memory_space<vmem>>, vector<1x1x8x128xf32>
    %149 = vector.shape_cast %148 : vector<1x1x8x128xf32> to vector<8x128xf32>
    %150 = arith.addf %149, %147 : vector<8x128xf32>
    %c0_93 = arith.constant 0 : index
    %c4_94 = arith.constant 4 : index
    %c0_95 = arith.constant 0 : index
    %c0_96 = arith.constant 0 : index
    %151 = vector.load %arg5[%c0_93, %c4_94, %c0_95, %c0_96] : memref<1x8x8x128xf32, #tpu.memory_space<vmem>>, vector<1x1x8x128xf32>
    %152 = vector.shape_cast %151 : vector<1x1x8x128xf32> to vector<8x128xf32>
    %153 = vector.shape_cast %150 : vector<8x128xf32> to vector<1x1x8x128xf32>
    tpu.vector_store %arg5[%c0_93, %c4_94, %c0_95, %c0_96], %153 {strides = array<i32>} : memref<1x8x8x128xf32, #tpu.memory_space<vmem>>, vector<1x1x8x128xf32>,
    %c0_97 = arith.constant 0 : index
    %c5_98 = arith.constant 5 : index
    %c0_99 = arith.constant 0 : index
    %c0_100 = arith.constant 0 : index
    %154 = vector.load %arg2[%c0_97, %c5_98, %c0_99, %c0_100] : memref<1x8x16x128xbf16, #tpu.memory_space<vmem>>, vector<1x3x16x128xbf16>
    %155 = arith.extf %154 : vector<1x3x16x128xbf16> to vector<1x3x16x128xf32>
    %c0_101 = arith.constant 0 : index
    %c0_102 = arith.constant 0 : index
    %c0_103 = arith.constant 0 : index
    %c0_104 = arith.constant 0 : index
    %156 = vector.load %arg4[%c0_101, %c0_102, %c0_103, %c0_104] : memref<1x3x16x128xbf16, #tpu.memory_space<vmem>>, vector<1x3x16x128xbf16>
    %157 = arith.extf %156 : vector<1x3x16x128xbf16> to vector<1x3x16x128xf32>
    %cst_105 = arith.constant 0.000000e+00 : f32
    %158 = vector.broadcast %cst_105 : f32 to vector<1x3x16x128xf32>
    %159 = arith.maximumf %155, %158 : vector<1x3x16x128xf32>
    %160 = math.absf %155 : vector<1x3x16x128xf32>
    %cst_106 = arith.constant 0.000000e+00 : f32
    %161 = vector.broadcast %cst_106 : f32 to vector<1x3x16x128xf32>
    %162 = arith.subf %161, %160 : vector<1x3x16x128xf32>
    %163 = math.exp %162 : vector<1x3x16x128xf32>
    %cst_107 = arith.constant 1.000000e+00 : f32
    %164 = vector.broadcast %cst_107 : f32 to vector<1x3x16x128xf32>
    %165 = arith.addf %164, %163 : vector<1x3x16x128xf32>
    %166 = math.log %165 : vector<1x3x16x128xf32>
    %167 = arith.addf %159, %166 : vector<1x3x16x128xf32>
    %168 = arith.mulf %157, %155 : vector<1x3x16x128xf32>
    %169 = arith.subf %167, %168 : vector<1x3x16x128xf32>
    %cst_108 = arith.constant dense<0.000000e+00> : vector<1x16x128xf32>
    %170 = vector.multi_reduction <add>, %169, %cst_108 [1] : vector<1x3x16x128xf32> to vector<1x16x128xf32>
    %171 = arith.mulf %20, %170 : vector<1x16x128xf32>
    %172 = vector.shape_cast %171 : vector<1x16x128xf32> to vector<16x128xf32>
    %173 = vector.extract_strided_slice %172 {offsets = [0, 0], sizes = [8, 128], strides = [1, 1]} : vector<16x128xf32> to vector<8x128xf32>
    %174 = vector.extract_strided_slice %172 {offsets = [8, 0], sizes = [8, 128], strides = [1, 1]} : vector<16x128xf32> to vector<8x128xf32>
    %175 = arith.addf %173, %174 : vector<8x128xf32>
    %c0_109 = arith.constant 0 : index
    %c5_110 = arith.constant 5 : index
    %c0_111 = arith.constant 0 : index
    %c0_112 = arith.constant 0 : index
    %176 = vector.load %arg5[%c0_109, %c5_110, %c0_111, %c0_112] : memref<1x8x8x128xf32, #tpu.memory_space<vmem>>, vector<1x1x8x128xf32>
    %177 = vector.shape_cast %176 : vector<1x1x8x128xf32> to vector<8x128xf32>
    %178 = arith.addf %177, %175 : vector<8x128xf32>
    %c0_113 = arith.constant 0 : index
    %c5_114 = arith.constant 5 : index
    %c0_115 = arith.constant 0 : index
    %c0_116 = arith.constant 0 : index
    %179 = vector.load %arg5[%c0_113, %c5_114, %c0_115, %c0_116] : memref<1x8x8x128xf32, #tpu.memory_space<vmem>>, vector<1x1x8x128xf32>
    %180 = vector.shape_cast %179 : vector<1x1x8x128xf32> to vector<8x128xf32>
    %181 = vector.shape_cast %178 : vector<8x128xf32> to vector<1x1x8x128xf32>
    tpu.vector_store %arg5[%c0_113, %c5_114, %c0_115, %c0_116], %181 {strides = array<i32>} : memref<1x8x8x128xf32, #tpu.memory_space<vmem>>, vector<1x1x8x128xf32>,
    %cst_117 = arith.constant dense<0.000000e+00> : vector<1x16x128xf32>
    %182 = vector.multi_reduction <add>, %157, %cst_117 [1] : vector<1x3x16x128xf32> to vector<1x16x128xf32>
    %183 = vector.shape_cast %182 : vector<1x16x128xf32> to vector<16x128xf32>
    %184 = vector.extract_strided_slice %183 {offsets = [0, 0], sizes = [8, 128], strides = [1, 1]} : vector<16x128xf32> to vector<8x128xf32>
    %185 = vector.extract_strided_slice %183 {offsets = [8, 0], sizes = [8, 128], strides = [1, 1]} : vector<16x128xf32> to vector<8x128xf32>
    %186 = arith.addf %184, %185 : vector<8x128xf32>
    %c0_118 = arith.constant 0 : index
    %c6_119 = arith.constant 6 : index
    %c0_120 = arith.constant 0 : index
    %c0_121 = arith.constant 0 : index
    %187 = vector.load %arg5[%c0_118, %c6_119, %c0_120, %c0_121] : memref<1x8x8x128xf32, #tpu.memory_space<vmem>>, vector<1x1x8x128xf32>
    %188 = vector.shape_cast %187 : vector<1x1x8x128xf32> to vector<8x128xf32>
    %189 = arith.addf %188, %186 : vector<8x128xf32>
    %c0_122 = arith.constant 0 : index
    %c6_123 = arith.constant 6 : index
    %c0_124 = arith.constant 0 : index
    %c0_125 = arith.constant 0 : index
    %190 = vector.load %arg5[%c0_122, %c6_123, %c0_124, %c0_125] : memref<1x8x8x128xf32, #tpu.memory_space<vmem>>, vector<1x1x8x128xf32>
    %191 = vector.shape_cast %190 : vector<1x1x8x128xf32> to vector<8x128xf32>
    %192 = vector.shape_cast %189 : vector<8x128xf32> to vector<1x1x8x128xf32>
    tpu.vector_store %arg5[%c0_122, %c6_123, %c0_124, %c0_125], %192 {strides = array<i32>} : memref<1x8x8x128xf32, #tpu.memory_space<vmem>>, vector<1x1x8x128xf32>,
    return
  }
  func.func @transform_0(%arg0: i32, %arg1: i32) -> (i32, i32, i32, i32) {
    %c0_i32 = arith.constant 0 : i32
    %c0_i32_0 = arith.constant 0 : i32
    %c0_i32_1 = arith.constant 0 : i32
    return %arg0, %c0_i32, %arg1, %c0_i32_0 : i32, i32, i32, i32
  }
  func.func @transform_1(%arg0: i32, %arg1: i32) -> (i32, i32, i32, i32) {
    %c0_i32 = arith.constant 0 : i32
    %c0_i32_0 = arith.constant 0 : i32
    %c0_i32_1 = arith.constant 0 : i32
    return %arg0, %c0_i32, %arg1, %c0_i32_0 : i32, i32, i32, i32
  }
  func.func @transform_2(%arg0: i32, %arg1: i32) -> (i32, i32, i32, i32) {
    %c0_i32 = arith.constant 0 : i32
    %c0_i32_0 = arith.constant 0 : i32
    %c0_i32_1 = arith.constant 0 : i32
    return %arg0, %c0_i32, %arg1, %c0_i32_0 : i32, i32, i32, i32
  }
  func.func @transform_3(%arg0: i32, %arg1: i32) -> (i32, i32, i32, i32) {
    %c0_i32 = arith.constant 0 : i32
    %c0_i32_0 = arith.constant 0 : i32
    %c0_i32_1 = arith.constant 0 : i32
    %c0_i32_2 = arith.constant 0 : i32
    return %arg0, %c0_i32, %c0_i32_0, %c0_i32_1 : i32, i32, i32, i32
  }
}

</mosaic_0001>

<llo_original>
// kernel: tpu_custom_call.1
$region0: #{tpu_custom_call.1}
  #allocation0 [shape = 'u32[]', space=smem, size = 0x4, offset = 0x4, fixed_abs, tag = 'smem constant byte address 0x4 - core index']
  #allocation1 [shape = 'u32[72,128]{1,0:T(1,128)}', space=vmem, size = 0x9000, scoped, tag = 'internal scratch']
  %s0 = inlined_call_operand.hbm [shape: bf16[2,8,16,128], index: 0, kind: input, shape index: {}]
  %s1 = inlined_call_operand.hbm [shape: bf16[2,7,16,128], index: 1, kind: input, shape index: {}]
  %s2 = inlined_call_operand.hbm [shape: bf16[2,3,16,128], index: 2, kind: input, shape index: {}]
  %s3 = inlined_call_operand.hbm [shape: f32[2,8,8,128], index: 3, kind: output, shape index: {}]
  %s4 = sld [smem:[#allocation0]]
  $region61: #{tpu_custom_call.1} parent=0
    _
  %s6 = ssub.s32 1, %s4
  %s7 = scalar_select 0, %s6, %s4
  $region1: #{tpu_custom_call.1} parent=0
    #allocation2 [shape = 'u8[65536]{0}', space=vmem, size = 0x10000, scoped, tag = 'input window, operand 0']
    #allocation3 [shape = 's32[2]{0}', space=sflag, size = 0x8, scoped, tag = 'scoped memory for tpu_custom_call.1']
    #allocation4 [shape = 's32[2]{0}', space=sflag, size = 0x8, scoped, tag = 'scoped memory for tpu_custom_call.1']
    #allocation5 [shape = 'u8[57344]{0}', space=vmem, size = 0xe000, scoped, tag = 'input window, operand 1']
    #allocation6 [shape = 's32[2]{0}', space=sflag, size = 0x8, scoped, tag = 'scoped memory for tpu_custom_call.1']
    #allocation7 [shape = 'u8[24576]{0}', space=vmem, size = 0x6000, scoped, tag = 'input window, operand 2']
    #allocation8 [shape = 'u8[65536]{0}', space=vmem, size = 0x10000, scoped, tag = 'output window, operand 0']
    %8 = vsyncpa [#allocation3], 0
    %s9 = scalar_lea.sflag [#allocation3], 1
    %10 = vsyncpa %s9, 0
    %11 = vsyncpa [#allocation6], 0
    %s12 = scalar_lea.sflag [#allocation6], 1
    %13 = vsyncpa %s12, 0
    %14 = vsyncpa [#allocation4], 0
    %s15 = scalar_lea.sflag [#allocation4], 1
    %16 = vsyncpa %s15, 0
    loop: start=0, step=1, limit=4
    $region2: #{tpu_custom_call.1} parent=1 // loop_pre_header
      _
    $region3: #{tpu_custom_call.1} parent=1 // loop_header
      %s18 = sphi 0, %s22
      %p19 = scmp.ge.s32.totalorder %s18, 4
      %s25 = sphi 0, %s37
      %s26 = sphi 0, %s33
      %s27 = sphi 0, %s25
      %s28 = sphi 0, %s26
      %s29 = sphi 0, %s27
      %s30 = sphi 0, %s28
      %s42 = sphi 0, %s44
      %s45 = sphi 0, %s42
      %s46 = sphi 0, %s45
      %s62 = sphi 0, %s46
      %s70 = sphi 0, %s72
      %s73 = sphi 0, %s70
      %s74 = sphi 0, %s73
      %s90 = sphi 0, %s74
      %s98 = sphi 0, %s100
      %s101 = sphi 0, %s98
      %s102 = sphi 0, %s101
      %s118 = sphi 0, %s102
      %s124 = sphi 0, %s126
      %s127 = sphi 0, %s124
      %s128 = sphi 0, %s127
      %s144 = sphi 0, %s128
    $region4: #{tpu_custom_call.1} parent=1 // loop_header_branch
      %21 = sbr.rel (%p19) target = $region8
    $region5: #{tpu_custom_call.1} parent=1 // loop_body
      %s23 = ssub.s32 %s18, 1
      %s24 = ssub.s32 %s18, 2
      %s31 = sadd.s32 1, %s26
      %p32 = scmp.ge.s32.totalorder %s31, 1
      %s33 = scalar_select %p32, 0, %s31
      %s34 = sadd.s32 1, %s25
      %s35 = scalar_select %p32, %s34, %s25
      %p36 = scmp.ge.s32.totalorder %s35, 2
      %s37 = scalar_select %p36, 0, %s35
      %s38 = ssub.s32 %s25, %s37
      %s39 = ssub.s32 %s26, %s33
      %s40 = sor.u32 %s38, %s39
      %p41 = scmp.eq.s32.totalorder %s40, 0
      %s43 = sadd.s32 %s42, 1
      %s44 = scalar_select %p41, %s42, %s43
      %p47 = pneg %p41
      %p48 = scmp.eq.s32.totalorder %s18, 1
      %p49 = por %p47, %p48
      %p50 = scmp.ne.s32.totalorder %s42, %s45
      %p51 = scmp.eq.s32.totalorder %s18, 0
      %p52 = por %p50, %p51
      %p53 = scmp.ne.s32.totalorder %s42, %s45
      %p54 = scmp.eq.s32.totalorder %s23, 1
      %p55 = por %p53, %p54
      %p56 = scmp.ne.s32.totalorder %s45, %s46
      %p57 = scmp.eq.s32.totalorder %s23, 0
      %p58 = por %p56, %p57
      %p59 = scmp.ne.s32.totalorder %s45, %s46
      %p60 = scmp.eq.s32.totalorder %s24, 1
      %p61 = por %p59, %p60
      %p63 = scmp.ne.s32.totalorder %s46, %s62
      %p64 = scmp.eq.s32.totalorder %s24, 0
      %p65 = por %p63, %p64
      %s66 = ssub.s32 %s25, %s37
      %s67 = ssub.s32 %s26, %s33
      %s68 = sor.u32 %s66, %s67
      %p69 = scmp.eq.s32.totalorder %s68, 0
      %s71 = sadd.s32 %s70, 1
      %s72 = scalar_select %p69, %s70, %s71
      %p75 = pneg %p69
      %p76 = scmp.eq.s32.totalorder %s18, 1
      %p77 = por %p75, %p76
      %p78 = scmp.ne.s32.totalorder %s70, %s73
      %p79 = scmp.eq.s32.totalorder %s18, 0
      %p80 = por %p78, %p79
      %p81 = scmp.ne.s32.totalorder %s70, %s73
      %p82 = scmp.eq.s32.totalorder %s23, 1
      %p83 = por %p81, %p82
      %p84 = scmp.ne.s32.totalorder %s73, %s74
      %p85 = scmp.eq.s32.totalorder %s23, 0
      %p86 = por %p84, %p85
      %p87 = scmp.ne.s32.totalorder %s73, %s74
      %p88 = scmp.eq.s32.totalorder %s24, 1
      %p89 = por %p87, %p88
      %p91 = scmp.ne.s32.totalorder %s74, %s90
      %p92 = scmp.eq.s32.totalorder %s24, 0
      %p93 = por %p91, %p92
      %s94 = ssub.s32 %s25, %s37
      %s95 = ssub.s32 %s26, %s33
      %s96 = sor.u32 %s94, %s95
      %p97 = scmp.eq.s32.totalorder %s96, 0
      %s99 = sadd.s32 %s98, 1
      %s100 = scalar_select %p97, %s98, %s99
      %p103 = pneg %p97
      %p104 = scmp.eq.s32.totalorder %s18, 1
      %p105 = por %p103, %p104
      %p106 = scmp.ne.s32.totalorder %s98, %s101
      %p107 = scmp.eq.s32.totalorder %s18, 0
      %p108 = por %p106, %p107
      %p109 = scmp.ne.s32.totalorder %s98, %s101
      %p110 = scmp.eq.s32.totalorder %s23, 1
      %p111 = por %p109, %p110
      %p112 = scmp.ne.s32.totalorder %s101, %s102
      %p113 = scmp.eq.s32.totalorder %s23, 0
      %p114 = por %p112, %p113
      %p115 = scmp.ne.s32.totalorder %s101, %s102
      %p116 = scmp.eq.s32.totalorder %s24, 1
      %p117 = por %p115, %p116
      %p119 = scmp.ne.s32.totalorder %s102, %s118
      %p120 = scmp.eq.s32.totalorder %s24, 0
      %p121 = por %p119, %p120
      %s122 = ssub.s32 %s25, %s37
      %p123 = scmp.eq.s32.totalorder %s122, 0
      %s125 = sadd.s32 %s124, 1
      %s126 = scalar_select %p123, %s124, %s125
      %p129 = pneg %p123
      %p130 = scmp.eq.s32.totalorder %s18, 1
      %p131 = por %p129, %p130
      %p132 = scmp.ne.s32.totalorder %s124, %s127
      %p133 = scmp.eq.s32.totalorder %s18, 0
      %p134 = por %p132, %p133
      %p135 = scmp.ne.s32.totalorder %s124, %s127
      %p136 = scmp.eq.s32.totalorder %s23, 1
      %p137 = por %p135, %p136
      %p138 = scmp.ne.s32.totalorder %s127, %s128
      %p139 = scmp.eq.s32.totalorder %s23, 0
      %p140 = por %p138, %p139
      %p141 = scmp.ne.s32.totalorder %s127, %s128
      %p142 = scmp.eq.s32.totalorder %s24, 1
      %p143 = por %p141, %p142
      %p145 = scmp.ne.s32.totalorder %s128, %s144
      %p146 = scmp.eq.s32.totalorder %s24, 0
      %p147 = por %p145, %p146
      %p148 = scmp.le.s32.totalorder 1, %s18
      %p149 = scmp.lt.s32.totalorder %s18, 3
      %p150 = pnand %p148, %p149
      %p151 = pneg %p150
      // Predicated region
      $region9: #{tpu_custom_call.1} parent=5 // pred_check
        _
      $region10: #{tpu_custom_call.1} parent=5 // pred_check_branch
        %153 = sbr.rel (%p150) target = $region12
      $region11: #{tpu_custom_call.1} parent=5 // pred_region
        %s154 = ssub.s32 %s18, 1
      $region12: #{tpu_custom_call.1} parent=5 // pred_fallthru
        _
      %p155 = scmp.lt.s32.totalorder %s18, 2
      // Predicated region
      $region13: #{tpu_custom_call.1} parent=5 // pred_check
        %p156 = pneg %p155
      $region14: #{tpu_custom_call.1} parent=5 // pred_check_branch
        %158 = sbr.rel (%p156) target = $region16
      $region15: #{tpu_custom_call.1} parent=5 // pred_region
        // Predicated region
        $region17: #{tpu_custom_call.1} parent=15 // pred_check
          %p159 = pneg %p52
        $region18: #{tpu_custom_call.1} parent=15 // pred_check_branch
          %161 = sbr.rel (%p159) target = $region20
        $region19: #{tpu_custom_call.1} parent=15 // pred_region
          %s162 = sand.u32 %s42, 1
          %s163 = scalar_lea.sflag [#allocation3], %s162
          %s164 = sand.u32 %s42, 1
          %s165 = smul.addr %s164, 64
          %s166 = scalar_lea.vmem [#allocation2], %s165
          %s167 = smul.u32 2, %s26
          %169 = vsyncadd %s163, 0
          %s170 = smul.addr %s25, 16
          %s171 = sadd.s32 %s167, %s170
          %s172 = smul.addr %s171, 4
          %s173 = scalar_lea.hbm %s0, %s172
          %s174 = sshll.u32 %s173, 4
          %s175 = int_to_ptr.hbm [resolvable:$true] %s174
          %s176 = sshll.u32 %s166, 4
          %s177 = int_to_ptr.vmem [resolvable:$true] %s176
          %182 = dma.hbm_to_vmem [thread:$0]  %s175, 1024, %s177, %s163, 64, 64, 4
        $region20: #{tpu_custom_call.1} parent=15 // pred_fallthru
          _
        // Predicated region
        $region21: #{tpu_custom_call.1} parent=15 // pred_check
          %p183 = pneg %p80
        $region22: #{tpu_custom_call.1} parent=15 // pred_check_branch
          %185 = sbr.rel (%p183) target = $region24
        $region23: #{tpu_custom_call.1} parent=15 // pred_region
          %s186 = sand.u32 %s18, 1
          %s187 = scalar_lea.sflag [#allocation6], %s186
          %s188 = sand.u32 %s70, 1
          %s189 = smul.addr %s188, 56
          %s190 = scalar_lea.vmem [#allocation5], %s189
          %s191 = smul.u32 2, %s26
          %193 = vsyncadd %s187, 0
          %s194 = smul.addr %s25, 14
          %s195 = sadd.s32 %s191, %s194
          %s196 = smul.addr %s195, 4
          %s197 = scalar_lea.hbm %s1, %s196
          %s198 = sshll.u32 %s197, 4
          %s199 = int_to_ptr.hbm [resolvable:$true] %s198
          %s200 = sshll.u32 %s190, 4
          %s201 = int_to_ptr.vmem [resolvable:$true] %s200
          %206 = dma.hbm_to_vmem [thread:$0]  %s199, 896, %s201, %s187, 64, 64, 4
        $region24: #{tpu_custom_call.1} parent=15 // pred_fallthru
          _
        // Predicated region
        $region25: #{tpu_custom_call.1} parent=15 // pred_check
          %p207 = pneg %p108
        $region26: #{tpu_custom_call.1} parent=15 // pred_check_branch
          %209 = sbr.rel (%p207) target = $region28
        $region27: #{tpu_custom_call.1} parent=15 // pred_region
          %s210 = sand.u32 %s18, 1
          %s211 = scalar_lea.sflag [#allocation6], %s210
          %s212 = sand.u32 %s98, 1
          %s213 = smul.addr %s212, 24
          %s214 = scalar_lea.vmem [#allocation7], %s213
          %s215 = smul.u32 2, %s26
          %217 = vsyncadd %s211, 0
          %s218 = smul.addr %s25, 6
          %s219 = sadd.s32 %s215, %s218
          %s220 = smul.addr %s219, 4
          %s221 = scalar_lea.hbm %s2, %s220
          %s222 = sshll.u32 %s221, 4
          %s223 = int_to_ptr.hbm [resolvable:$true] %s222
          %s224 = sshll.u32 %s214, 4
          %s225 = int_to_ptr.vmem [resolvable:$true] %s224
          %230 = dma.hbm_to_vmem [thread:$0]  %s223, 384, %s225, %s211, 64, 64, 4
        $region28: #{tpu_custom_call.1} parent=15 // pred_fallthru
          _
      $region16: #{tpu_custom_call.1} parent=5 // pred_fallthru
        _
      %p231 = scmp.le.s32.totalorder 1, %s18
      %p232 = scmp.lt.s32.totalorder %s18, 3
      %p233 = pnand %p231, %p232
      %p234 = pneg %p233
      // Predicated region
      $region29: #{tpu_custom_call.1} parent=5 // pred_check
        _
      $region30: #{tpu_custom_call.1} parent=5 // pred_check_branch
        %236 = sbr.rel (%p233) target = $region32
      $region31: #{tpu_custom_call.1} parent=5 // pred_region
        %s237 = ssub.s32 %s18, 1
        %s238 = sand.u32 %s45, 1
        %s239 = scalar_lea.sflag [#allocation3], %s238
        %s240 = sand.u32 %s45, 1
        %s241 = smul.addr %s240, 64
        %s242 = scalar_lea.vmem [#allocation2], %s241
        // Predicated region
        $region33: #{tpu_custom_call.1} parent=31 // pred_check
          %p243 = pneg %p58
        $region34: #{tpu_custom_call.1} parent=31 // pred_check_branch
          %245 = sbr.rel (%p243) target = $region36
        $region35: #{tpu_custom_call.1} parent=31 // pred_region
          %247 = dma.done %s239, 1024
        $region36: #{tpu_custom_call.1} parent=31 // pred_fallthru
          _
        %s248 = sand.u32 %s23, 1
        %s249 = scalar_lea.sflag [#allocation6], %s248
        %s250 = sand.u32 %s73, 1
        %s251 = smul.addr %s250, 56
        %s252 = scalar_lea.vmem [#allocation5], %s251
        // Predicated region
        $region37: #{tpu_custom_call.1} parent=31 // pred_check
          %p253 = pneg %p86
        $region38: #{tpu_custom_call.1} parent=31 // pred_check_branch
          %255 = sbr.rel (%p253) target = $region40
        $region39: #{tpu_custom_call.1} parent=31 // pred_region
          %257 = dma.done %s249, 896
        $region40: #{tpu_custom_call.1} parent=31 // pred_fallthru
          _
        %s258 = sand.u32 %s23, 1
        %s259 = scalar_lea.sflag [#allocation6], %s258
        %s260 = sand.u32 %s101, 1
        %s261 = smul.addr %s260, 24
        %s262 = scalar_lea.vmem [#allocation7], %s261
        // Predicated region
        $region41: #{tpu_custom_call.1} parent=31 // pred_check
          %p263 = pneg %p114
        $region42: #{tpu_custom_call.1} parent=31 // pred_check_branch
          %265 = sbr.rel (%p263) target = $region44
        $region43: #{tpu_custom_call.1} parent=31 // pred_region
          %267 = dma.done %s259, 384
        $region44: #{tpu_custom_call.1} parent=31 // pred_fallthru
          _
        %s268 = sand.u32 %s45, 1
        %s269 = scalar_lea.sflag [#allocation3], %s268
        %s270 = sand.u32 %s45, 1
        %s271 = smul.addr %s270, 64
        %s272 = scalar_lea.vmem [#allocation2], %s271
        %p273 = pneg %p58
        %p274 = pneg %p55
        %s275 = sand.u32 %s23, 1
        %s276 = scalar_lea.sflag [#allocation6], %s275
        %s277 = sand.u32 %s73, 1
        %s278 = smul.addr %s277, 56
        %s279 = scalar_lea.vmem [#allocation5], %s278
        %p280 = pneg %p86
        %p281 = pneg %p83
        %s282 = sand.u32 %s23, 1
        %s283 = scalar_lea.sflag [#allocation6], %s282
        %s284 = sand.u32 %s101, 1
        %s285 = smul.addr %s284, 24
        %s286 = scalar_lea.vmem [#allocation7], %s285
        %p287 = pneg %p114
        %p288 = pneg %p111
        %p289 = pneg %p140
        %p290 = pneg %p137
        %s291 = sand.u32 %s127, 1
        %s292 = scalar_lea.sflag [#allocation4], %s291
        %s293 = sand.u32 %s127, 1
        %s294 = smul.addr %s293, 64
        %s295 = scalar_lea.vmem [#allocation8], %s294
        %s296 = smul.u32 2, %s28
        %s297 = smul.u32 2, %s28
        %s298 = smul.u32 2, %s28
        %p299 = scmp.eq.s32.totalorder %s28, 0
        // Predicated region
        $region45: #{tpu_custom_call.1} parent=31 // pred_check
          %p300 = pneg %p299
        $region46: #{tpu_custom_call.1} parent=31 // pred_check_branch
          %302 = sbr.rel (%p300) target = $region48
        $region47: #{tpu_custom_call.1} parent=31 // pred_region
          %303 = vst [vmem:[%s295] sm:$0xff] 0.0
          %304 = vst [vmem:[%s295 + $0x8] sm:$0xff] 0.0
          %305 = vst [vmem:[%s295 + $0x10] sm:$0xff] 0.0
          %306 = vst [vmem:[%s295 + $0x18] sm:$0xff] 0.0
          %307 = vst [vmem:[%s295 + $0x20] sm:$0xff] 0.0
          %308 = vst [vmem:[%s295 + $0x28] sm:$0xff] 0.0
          %309 = vst [vmem:[%s295 + $0x30] sm:$0xff] 0.0
          %310 = vst [vmem:[%s295 + $0x38] sm:$0xff] 0.0
        $region48: #{tpu_custom_call.1} parent=31 // pred_fallthru
          _
        %v311 = vld [vmem:[%s242] sm:$0xf]
        %v312 = vld [vmem:[%s242 + $0x4] sm:$0xf]
        %v313 = vunpack.c.l.bf16 %v311
        %v314 = vunpack.c.l.bf16 %v312
        %s315 = scalar_lea.vmem %s242, 8 [#allocation2]
        %v316 = vld [vmem:[%s315] sm:$0xf]
        %v317 = vld [vmem:[%s315 + $0x4] sm:$0xf]
        %v318 = vunpack.c.l.bf16 %v316
        %v319 = vunpack.c.l.bf16 %v317
        %s320 = scalar_lea.vmem %s242, 16 [#allocation2]
        %v321 = vld [vmem:[%s320] sm:$0xf]
        %v322 = vld [vmem:[%s320 + $0x4] sm:$0xf]
        %v323 = vunpack.c.l.bf16 %v321
        %v324 = vunpack.c.l.bf16 %v322
        %s325 = scalar_lea.vmem %s242, 24 [#allocation2]
        %v326 = vld [vmem:[%s325] sm:$0xf]
        %v327 = vld [vmem:[%s325 + $0x4] sm:$0xf]
        %v328 = vunpack.c.l.bf16 %v326
        %v329 = vunpack.c.l.bf16 %v327
        %s330 = scalar_lea.vmem %s242, 32 [#allocation2]
        %v331 = vld [vmem:[%s330] sm:$0xf]
        %v332 = vld [vmem:[%s330 + $0x4] sm:$0xf]
        %v333 = vunpack.c.l.bf16 %v331
        %v334 = vunpack.c.l.bf16 %v332
        %v335 = vld [vmem:[%s252] sm:$0xf]
        %v336 = vld [vmem:[%s252 + $0x4] sm:$0xf]
        %v337 = vunpack.c.l.bf16 %v335
        %v338 = vunpack.c.l.bf16 %v336
        %s339 = scalar_lea.vmem %s252, 8 [#allocation5]
        %v340 = vld [vmem:[%s339] sm:$0xf]
        %v341 = vld [vmem:[%s339 + $0x4] sm:$0xf]
        %v342 = vunpack.c.l.bf16 %v340
        %v343 = vunpack.c.l.bf16 %v341
        %s344 = scalar_lea.vmem %s252, 16 [#allocation5]
        %v345 = vld [vmem:[%s344] sm:$0xf]
        %v346 = vld [vmem:[%s344 + $0x4] sm:$0xf]
        %v347 = vunpack.c.l.bf16 %v345
        %v348 = vunpack.c.l.bf16 %v346
        %s349 = scalar_lea.vmem %s252, 24 [#allocation5]
        %v350 = vld [vmem:[%s349] sm:$0xf]
        %v351 = vld [vmem:[%s349 + $0x4] sm:$0xf]
        %v352 = vunpack.c.l.bf16 %v350
        %v353 = vunpack.c.l.bf16 %v351
        %s354 = scalar_lea.vmem %s252, 32 [#allocation5]
        %v355 = vld [vmem:[%s354] sm:$0xf]
        %v356 = vld [vmem:[%s354 + $0x4] sm:$0xf]
        %v357 = vunpack.c.l.bf16 %v355
        %v358 = vunpack.c.l.bf16 %v356
        %s359 = scalar_lea.vmem %s252, 40 [#allocation5]
        %v360 = vld [vmem:[%s359] sm:$0xf]
        %v361 = vld [vmem:[%s359 + $0x4] sm:$0xf]
        %v362 = vunpack.c.l.bf16 %v360
        %v363 = vunpack.c.l.bf16 %v361
        %s364 = scalar_lea.vmem %s252, 48 [#allocation5]
        %v365 = vld [vmem:[%s364] sm:$0xf]
        %v366 = vld [vmem:[%s364 + $0x4] sm:$0xf]
        %v367 = vunpack.c.l.bf16 %v365
        %v368 = vunpack.c.l.bf16 %v366
        %v369 = vmul.f32 %v337, %v367
        %v370 = vmul.f32 %v338, %v368
        %v371 = vmax.f32 %v313, 0.0
        %v372 = vmax.f32 %v314, 0.0
        %v373 = vand.u32 2147483647, %v313
        %v374 = vand.u32 2147483647, %v314
        %v375 = vsub.f32 0.0, %v373
        %v376 = vsub.f32 0.0, %v374
        %v377 = vmul.f32 %v375, 1.442695
        %v378 = vpow.pop %v377
        %v379 = vmul.f32 %v376, 1.442695
        %v380 = vpow.pop %v379
        %v381 = vadd.f32 %v378, 1.0
        %v382 = vadd.f32 %v380, 1.0
        %v383 = vlog2.pop %v381
        %v384 = vmul.f32 %v383, 0.6931472
        %v385 = vlog2.pop %v382
        %v386 = vmul.f32 %v385, 0.6931472
        %v387 = vadd.f32 %v371, %v384
        %v388 = vadd.f32 %v372, %v386
        %v389 = vmul.f32 %v347, %v313
        %v390 = vmul.f32 %v348, %v314
        %v391 = vsub.f32 %v387, %v389
        %v392 = vsub.f32 %v388, %v390
        %v393 = vmul.f32 %v369, %v391
        %v394 = vmul.f32 %v370, %v392
        %v395 = vadd.f32 %v393, %v394
        %v396 = vld [vmem:[%s295] sm:$0xff]
        %v397 = vadd.f32 %v396, %v395
        %398 = vst [vmem:[%s295] sm:$0xff] %v397
        %v399 = vmax.f32 %v318, 0.0
        %v400 = vmax.f32 %v319, 0.0
        %v401 = vand.u32 2147483647, %v318
        %v402 = vand.u32 2147483647, %v319
        %v403 = vsub.f32 0.0, %v401
        %v404 = vsub.f32 0.0, %v402
        %v405 = vmul.f32 %v403, 1.442695
        %v406 = vpow.pop %v405
        %v407 = vmul.f32 %v404, 1.442695
        %v408 = vpow.pop %v407
        %v409 = vadd.f32 %v406, 1.0
        %v410 = vadd.f32 %v408, 1.0
        %v411 = vlog2.pop %v409
        %v412 = vmul.f32 %v411, 0.6931472
        %v413 = vlog2.pop %v410
        %v414 = vmul.f32 %v413, 0.6931472
        %v415 = vadd.f32 %v399, %v412
        %v416 = vadd.f32 %v400, %v414
        %v417 = vmul.f32 %v352, %v318
        %v418 = vmul.f32 %v353, %v319
        %v419 = vsub.f32 %v415, %v417
        %v420 = vsub.f32 %v416, %v418
        %v421 = vmul.f32 %v369, %v419
        %v422 = vmul.f32 %v370, %v420
        %v423 = vadd.f32 %v421, %v422
        %s424 = scalar_lea.vmem %s295, 8 [#allocation8]
        %v425 = vld [vmem:[%s424] sm:$0xff]
        %v426 = vadd.f32 %v425, %v423
        %427 = vst [vmem:[%s424] sm:$0xff] %v426
        %v428 = vsub.f32 %v323, %v357
        %v429 = vsub.f32 %v324, %v358
        %v430 = vand.u32 2147483647, %v428
        %v431 = vand.u32 2147483647, %v429
        %vm432 = vcmp.lt.f32.partialorder %v430, 1.0
        %vm433 = vcmp.lt.f32.partialorder %v431, 1.0
        %v434 = vmul.f32 %v430, 0.5
        %v435 = vmul.f32 %v431, 0.5
        %v436 = vmul.f32 %v434, %v430
        %v437 = vmul.f32 %v435, %v431
        %v438 = vsub.f32 %v430, 0.5
        %v439 = vsub.f32 %v431, 0.5
        %v440 = vsel %vm432, %v436, %v438
        %v441 = vsel %vm433, %v437, %v439
        %v442 = vmul.f32 %v369, %v440
        %v443 = vmul.f32 %v370, %v441
        %v444 = vadd.f32 %v442, %v443
        %s445 = scalar_lea.vmem %s295, 16 [#allocation8]
        %v446 = vld [vmem:[%s445] sm:$0xff]
        %v447 = vadd.f32 %v446, %v444
        %448 = vst [vmem:[%s445] sm:$0xff] %v447
        %v449 = vsub.f32 %v328, %v362
        %v450 = vsub.f32 %v329, %v363
        %v451 = vand.u32 2147483647, %v449
        %v452 = vand.u32 2147483647, %v450
        %vm453 = vcmp.lt.f32.partialorder %v451, 1.0
        %vm454 = vcmp.lt.f32.partialorder %v452, 1.0
        %v455 = vmul.f32 %v451, 0.5
        %v456 = vmul.f32 %v452, 0.5
        %v457 = vmul.f32 %v455, %v451
        %v458 = vmul.f32 %v456, %v452
        %v459 = vsub.f32 %v451, 0.5
        %v460 = vsub.f32 %v452, 0.5
        %v461 = vsel %vm453, %v457, %v459
        %v462 = vsel %vm454, %v458, %v460
        %v463 = vmul.f32 %v369, %v461
        %v464 = vmul.f32 %v370, %v462
        %v465 = vadd.f32 %v463, %v464
        %s466 = scalar_lea.vmem %s295, 24 [#allocation8]
        %v467 = vld [vmem:[%s466] sm:$0xff]
        %v468 = vadd.f32 %v467, %v465
        %469 = vst [vmem:[%s466] sm:$0xff] %v468
        %v470 = vmax.f32 %v333, 0.0
        %v471 = vmax.f32 %v334, 0.0
        %v472 = vand.u32 2147483647, %v333
        %v473 = vand.u32 2147483647, %v334
        %v474 = vsub.f32 0.0, %v472
        %v475 = vsub.f32 0.0, %v473
        %v476 = vmul.f32 %v474, 1.442695
        %v477 = vpow.pop %v476
        %v478 = vmul.f32 %v475, 1.442695
        %v479 = vpow.pop %v478
        %v480 = vadd.f32 %v477, 1.0
        %v481 = vadd.f32 %v479, 1.0
        %v482 = vlog2.pop %v480
        %v483 = vmul.f32 %v482, 0.6931472
        %v484 = vlog2.pop %v481
        %v485 = vmul.f32 %v484, 0.6931472
        %v486 = vadd.f32 %v470, %v483
        %v487 = vadd.f32 %v471, %v485
        %v488 = vsub.f32 %v486, %v333
        %v489 = vsub.f32 %v487, %v334
        %v490 = vmul.f32 %v337, %v488
        %v491 = vmul.f32 %v338, %v489
        %v492 = vmul.f32 %v342, 0.5
        %v493 = vmul.f32 %v343, 0.5
        %v494 = vmul.f32 %v492, %v486
        %v495 = vmul.f32 %v493, %v487
        %v496 = vadd.f32 %v490, %v494
        %v497 = vadd.f32 %v491, %v495
        %v498 = vadd.f32 %v496, %v497
        %s499 = scalar_lea.vmem %s295, 32 [#allocation8]
        %v500 = vld [vmem:[%s499] sm:$0xff]
        %v501 = vadd.f32 %v500, %v498
        %502 = vst [vmem:[%s499] sm:$0xff] %v501
        %s503 = scalar_lea.vmem %s242, 40 [#allocation2]
        %v504 = vld [vmem:[%s503] sm:$0xf]
        %v505 = vld [vmem:[%s503 + $0x4] sm:$0xf]
        %v506 = vld [vmem:[%s503 + $0x8] sm:$0xf]
        %v507 = vld [vmem:[%s503 + $0xc] sm:$0xf]
        %v508 = vld [vmem:[%s503 + $0x10] sm:$0xf]
        %v509 = vld [vmem:[%s503 + $0x14] sm:$0xf]
        %v510 = vunpack.c.l.bf16 %v504
        %v511 = vunpack.c.l.bf16 %v505
        %v512 = vunpack.c.l.bf16 %v506
        %v513 = vunpack.c.l.bf16 %v507
        %v514 = vunpack.c.l.bf16 %v508
        %v515 = vunpack.c.l.bf16 %v509
        %v516 = vld [vmem:[%s262] sm:$0xf]
        %v517 = vld [vmem:[%s262 + $0x4] sm:$0xf]
        %v518 = vld [vmem:[%s262 + $0x8] sm:$0xf]
        %v519 = vld [vmem:[%s262 + $0xc] sm:$0xf]
        %v520 = vld [vmem:[%s262 + $0x10] sm:$0xf]
        %v521 = vld [vmem:[%s262 + $0x14] sm:$0xf]
        %v522 = vunpack.c.l.bf16 %v516
        %v523 = vunpack.c.l.bf16 %v517
        %v524 = vunpack.c.l.bf16 %v518
        %v525 = vunpack.c.l.bf16 %v519
        %v526 = vunpack.c.l.bf16 %v520
        %v527 = vunpack.c.l.bf16 %v521
        %v528 = vmax.f32 %v510, 0.0
        %v529 = vmax.f32 %v511, 0.0
        %v530 = vmax.f32 %v512, 0.0
        %v531 = vmax.f32 %v513, 0.0
        %v532 = vmax.f32 %v514, 0.0
        %v533 = vmax.f32 %v515, 0.0
        %v534 = vand.u32 2147483647, %v510
        %v535 = vand.u32 2147483647, %v511
        %v536 = vand.u32 2147483647, %v512
        %v537 = vand.u32 2147483647, %v513
        %v538 = vand.u32 2147483647, %v514
        %v539 = vand.u32 2147483647, %v515
        %v540 = vsub.f32 0.0, %v534
        %v541 = vsub.f32 0.0, %v535
        %v542 = vsub.f32 0.0, %v536
        %v543 = vsub.f32 0.0, %v537
        %v544 = vsub.f32 0.0, %v538
        %v545 = vsub.f32 0.0, %v539
        %v546 = vmul.f32 %v540, 1.442695
        %v547 = vpow.pop %v546
        %v548 = vmul.f32 %v541, 1.442695
        %v549 = vpow.pop %v548
        %v550 = vmul.f32 %v542, 1.442695
        %v551 = vpow.pop %v550
        %v552 = vmul.f32 %v543, 1.442695
        %v553 = vpow.pop %v552
        %v554 = vmul.f32 %v544, 1.442695
        %v555 = vpow.pop %v554
        %v556 = vmul.f32 %v545, 1.442695
        %v557 = vpow.pop %v556
        %v558 = vadd.f32 %v547, 1.0
        %v559 = vadd.f32 %v549, 1.0
        %v560 = vadd.f32 %v551, 1.0
        %v561 = vadd.f32 %v553, 1.0
        %v562 = vadd.f32 %v555, 1.0
        %v563 = vadd.f32 %v557, 1.0
        %v564 = vlog2.pop %v558
        %v565 = vmul.f32 %v564, 0.6931472
        %v566 = vlog2.pop %v559
        %v567 = vmul.f32 %v566, 0.6931472
        %v568 = vlog2.pop %v560
        %v569 = vmul.f32 %v568, 0.6931472
        %v570 = vlog2.pop %v561
        %v571 = vmul.f32 %v570, 0.6931472
        %v572 = vlog2.pop %v562
        %v573 = vmul.f32 %v572, 0.6931472
        %v574 = vlog2.pop %v563
        %v575 = vmul.f32 %v574, 0.6931472
        %v576 = vadd.f32 %v528, %v565
        %v577 = vadd.f32 %v529, %v567
        %v578 = vadd.f32 %v530, %v569
        %v579 = vadd.f32 %v531, %v571
        %v580 = vadd.f32 %v532, %v573
        %v581 = vadd.f32 %v533, %v575
        %v582 = vmul.f32 %v522, %v510
        %v583 = vmul.f32 %v523, %v511
        %v584 = vmul.f32 %v524, %v512
        %v585 = vmul.f32 %v525, %v513
        %v586 = vmul.f32 %v526, %v514
        %v587 = vmul.f32 %v527, %v515
        %v588 = vsub.f32 %v576, %v582
        %v589 = vsub.f32 %v577, %v583
        %v590 = vsub.f32 %v578, %v584
        %v591 = vsub.f32 %v579, %v585
        %v592 = vsub.f32 %v580, %v586
        %v593 = vsub.f32 %v581, %v587
        %v594 = vadd.f32 %v588, %v590
        %v595 = vadd.f32 %v594, %v592
        %v596 = vadd.f32 %v589, %v591
        %v597 = vadd.f32 %v596, %v593
        %v598 = vmul.f32 %v337, %v595
        %v599 = vmul.f32 %v338, %v597
        %v600 = vadd.f32 %v598, %v599
        %s601 = scalar_lea.vmem %s295, 40 [#allocation8]
        %v602 = vld [vmem:[%s601] sm:$0xff]
        %v603 = vadd.f32 %v602, %v600
        %604 = vst [vmem:[%s601] sm:$0xff] %v603
        %v605 = vadd.f32 %v522, %v524
        %v606 = vadd.f32 %v605, %v526
        %v607 = vadd.f32 %v523, %v525
        %v608 = vadd.f32 %v607, %v527
        %v609 = vadd.f32 %v606, %v608
        %s610 = scalar_lea.vmem %s295, 48 [#allocation8]
        %v611 = vld [vmem:[%s610] sm:$0xff]
        %v612 = vadd.f32 %v611, %v609
        %613 = vst [vmem:[%s610] sm:$0xff] %v612
        %s614 = sand.u32 %s127, 1
        %s615 = scalar_lea.sflag [#allocation4], %s614
        %s616 = sand.u32 %s127, 1
        %s617 = smul.addr %s616, 64
        %s618 = scalar_lea.vmem [#allocation8], %s617
        // Predicated region
        $region49: #{tpu_custom_call.1} parent=31 // pred_check
          %p619 = pneg %p137
        $region50: #{tpu_custom_call.1} parent=31 // pred_check_branch
          %621 = sbr.rel (%p619) target = $region52
        $region51: #{tpu_custom_call.1} parent=31 // pred_region
          %623 = vsyncadd %s615, 0
          %s624 = smul.addr %s27, 8
          %s625 = smul.addr %s624, 8
          %s626 = scalar_lea.hbm %s3, %s625
          %s627 = sshll.u32 %s618, 4
          %s628 = int_to_ptr.vmem [resolvable:$true] %s627
          %s629 = sshll.u32 %s626, 4
          %s630 = int_to_ptr.hbm [resolvable:$true] %s629
          %635 = dma.vmem_to_hbm [thread:$0]  %s628, 1024, %s630, %s615, 128, 128, 8
        $region52: #{tpu_custom_call.1} parent=31 // pred_fallthru
          _
      $region32: #{tpu_custom_call.1} parent=5 // pred_fallthru
        _
      %p636 = scmp.le.s32.totalorder 2, %s18
      // Predicated region
      $region53: #{tpu_custom_call.1} parent=5 // pred_check
        %p637 = pneg %p636
      $region54: #{tpu_custom_call.1} parent=5 // pred_check_branch
        %639 = sbr.rel (%p637) target = $region56
      $region55: #{tpu_custom_call.1} parent=5 // pred_region
        %s640 = ssub.s32 %s18, 2
        // Predicated region
        $region57: #{tpu_custom_call.1} parent=55 // pred_check
          %p641 = pneg %p143
        $region58: #{tpu_custom_call.1} parent=55 // pred_check_branch
          %643 = sbr.rel (%p641) target = $region60
        $region59: #{tpu_custom_call.1} parent=55 // pred_region
          %s644 = sand.u32 %s128, 1
          %s645 = scalar_lea.sflag [#allocation4], %s644
          %s646 = sand.u32 %s128, 1
          %s647 = smul.addr %s646, 64
          %s648 = scalar_lea.vmem [#allocation8], %s647
          %650 = dma.done %s645, 1024
        $region60: #{tpu_custom_call.1} parent=55 // pred_fallthru
          _
      $region56: #{tpu_custom_call.1} parent=5 // pred_fallthru
        _
    $region6: #{tpu_custom_call.1} parent=1 // loop_footer
      %s22 = sadd.s32 1, %s18
    $region7: #{tpu_custom_call.1} parent=1 // loop_footer_branch
      %17 = sbr.rel target = $region3
    $region8: #{tpu_custom_call.1} parent=1 // loop_exit
      _
    %651 = vsyncpa [#allocation3], 1
    %s652 = scalar_lea.sflag [#allocation3], 1
    %653 = vsyncpa %s652, 1
    %654 = vsyncpa [#allocation6], 1
    %s655 = scalar_lea.sflag [#allocation6], 1
    %656 = vsyncpa %s655, 1
    %657 = vsyncpa [#allocation4], 1
    %s658 = scalar_lea.sflag [#allocation4], 1
    %659 = vsyncpa %s658, 1

</llo_original>
